<compile_context>
chip_gen: v7x
topology: tpu7x:2x2x1
jax: 0.10.0
libtpu: 0.0.40
codegen_flags: <defaults>
</compile_context>

<pallas_src>
import functools

import jax
import jax.numpy as jnp
from jax.experimental import pallas as pl
from jax.experimental.pallas import tpu as pltpu

NUM_CLASSES = 10
CLASS_PAD = 16          # classes padded to 16 so 8 positions * 16 classes = 128 lanes


def _prep_w1(w1):
    """(hidden, d_in) -> (d_in, hidden) bf16, MXU-native (K, N)."""
    return jnp.transpose(w1).astype(jnp.bfloat16)


def _prep_w2(w2, d_in, hidden):
    """(10*d_in, hidden) -> (hidden, d_in_pad*16) bf16, interleaved layout.

    Output column q = j*16 + c holds W2[c*d_in + j, :].
    - positions j >= d_in (pad to multiple of 8) duplicate the j=0 column of
      that class, so the per-class max is unchanged (NOT zero-padded).
    - classes c >= 10 are zero; those lanes are discarded by the wrapper.
    """
    d_in_pad = ((d_in + 7) // 8) * 8
    w2_r = w2.reshape(NUM_CLASSES, d_in, hidden)
    if d_in_pad != d_in:
        dup = jnp.broadcast_to(w2_r[:, :1, :], (NUM_CLASSES, d_in_pad - d_in, hidden))
        w2_r = jnp.concatenate([w2_r, dup], axis=1)
    zeros = jnp.zeros((CLASS_PAD - NUM_CLASSES, d_in_pad, hidden), w2_r.dtype)
    w2_r = jnp.concatenate([w2_r, zeros], axis=0)            # (16, d_in_pad, hidden)
    w2_cols = jnp.transpose(w2_r, (1, 0, 2)).reshape(d_in_pad * CLASS_PAD, hidden)
    return jnp.transpose(w2_cols).astype(jnp.bfloat16)        # (hidden, d_in_pad*16)


def fc_single_layer_kernel(x_ref, w1_ref, w2_ref, o_ref, *, n_groups):
    x = x_ref[...]                        # (TM, d_in)  bf16
    w1 = w1_ref[...]                      # (d_in, hidden) bf16
    w2 = w2_ref[...]                      # (hidden, d_in_pad*16) bf16

    # h1 = relu(x @ W1) — MXU, f32 accumulate; relu in f32 (v5e-friendly).
    h1 = jnp.dot(x, w1, preferred_element_type=jnp.float32)   # (TM, hidden)
    h1 = jnp.maximum(h1, 0.0).astype(jnp.bfloat16)

    # One wide matmul: (TM, hidden) @ (hidden, d_in_pad*16).
    h2 = jnp.dot(h1, w2, preferred_element_type=jnp.float32)  # (TM, d_in_pad*16)

    # Per-class max.  Layout: lane (within each 128-lane group) = j_local*16 + c.
    # Stage 1: fold the lane-aligned 128-wide groups (pure VPU maxima).
    acc = h2[:, 0:128]
    for g in range(1, n_groups):
        acc = jnp.maximum(acc, h2[:, g * 128:(g + 1) * 128])
    # Stage 2: fold the 8 position slots inside the vreg (stride 16) via rolls.
    acc = jnp.maximum(acc, pltpu.roll(acc, shift=64, axis=1))
    acc = jnp.maximum(acc, pltpu.roll(acc, shift=32, axis=1))
    acc = jnp.maximum(acc, pltpu.roll(acc, shift=16, axis=1))
    # Class maxima now sit in lanes 0..9 (replicated every 16 lanes).
    o_ref[...] = acc.astype(o_ref.dtype)   # single lane-dense (TM, 128) store


def fc_single_layer(x, w1, w2, *, block_m=None):
    """x: (B, d_in) float; w1: (hidden, d_in); w2: (10*d_in, hidden).  Returns (B, 10) f32.

    Weight prep (+bf16 cast) happens host-side; in a real model it would be
    done once at load time, not per call.
    """
    B, d_in = x.shape
    hidden = w1.shape[0]
    assert w1.shape == (hidden, d_in)
    assert w2.shape == (NUM_CLASSES * d_in, hidden)

    d_in_pad = ((d_in + 7) // 8) * 8
    n2 = d_in_pad * CLASS_PAD
    n_groups = n2 // 128

    # One-time host-side prep: bf16 + MXU-native layouts, bf16 streamed input.
    x_bf = x.astype(jnp.bfloat16)
    w1_p = _prep_w1(w1)
    w2_p = _prep_w2(w2, d_in, hidden)

    # Tile the batch: big tiles amortize per-step overhead; >=2 grid steps for
    # large B so both v7x TensorCores get work.
    if block_m is None:
        if B <= 256:
            block_m = B
        elif B <= 1024:
            block_m = 256
        else:
            block_m = 512
    grid_b = pl.cdiv(B, block_m)
    b_pad = grid_b * block_m
    if b_pad != B:
        x_bf = jnp.pad(x_bf, ((0, b_pad - B), (0, 0)))

    kernel = functools.partial(fc_single_layer_kernel, n_groups=n_groups)

    out_padded = pl.pallas_call(
        kernel,
        out_shape=jax.ShapeDtypeStruct((b_pad, 128), jnp.float32),
        grid=(grid_b,),
        in_specs=[
            pl.BlockSpec((block_m, d_in), lambda i: (i, 0)),   # x: tiled over batch
            pl.BlockSpec((d_in, hidden), lambda i: (0, 0)),    # W1: resident
            pl.BlockSpec((hidden, n2), lambda i: (0, 0)),      # W2: resident
        ],
        out_specs=pl.BlockSpec((block_m, 128), lambda i: (i, 0)),
        compiler_params=pltpu.CompilerParams(
            dimension_semantics=("parallel",),
        ),
    )(x_bf, w1_p, w2_p)

    return out_padded[:B, :NUM_CLASSES]


def fc_single_layer_ref(x, w1, w2):
    """Pure-JAX reference mirroring the kernel's bf16 quantization points."""
    q = lambda a: a.astype(jnp.bfloat16).astype(jnp.float32)
    xq, w1q, w2q = q(x), q(w1), q(w2)
    h1 = jax.nn.relu(jnp.dot(xq, w1q.T))
    h1q = q(h1)
    h2 = jnp.dot(h1q, w2q.T)
    return jnp.max(h2.reshape(x.shape[0], NUM_CLASSES, -1), axis=2)


if __name__ == "__main__":
    # Small, MNIST-1D-like shapes: input_size=40, hidden_dim=32, batch=8.
    B, input_size, hidden_dim = 8, 40, 32

    key = jax.random.PRNGKey(0)
    kx, k1, k2 = jax.random.split(key, 3)

    x = jax.random.normal(kx, (B, input_size), dtype=jnp.float32)

    # nn.Linear-style init: U(-1/sqrt(fan_in), 1/sqrt(fan_in)), bias=False.
    bound1 = 1.0 / jnp.sqrt(jnp.float32(input_size))
    w1 = jax.random.uniform(k1, (hidden_dim, input_size),
                            minval=-bound1, maxval=bound1, dtype=jnp.float32)
    bound2 = 1.0 / jnp.sqrt(jnp.float32(hidden_dim))
    w2 = jax.random.uniform(k2, (NUM_CLASSES * input_size, hidden_dim),
                            minval=-bound2, maxval=bound2, dtype=jnp.float32)

    out = fc_single_layer(x, w1, w2)
    out = jax.block_until_ready(out)

    # NOTE: bf16 MXU operands (f32 accumulate) are a deliberate deviation from
    # the f32 PyTorch module; the reference applies the same quantization.
    ref = fc_single_layer_ref(x, w1, w2)

    assert out.shape == (B, NUM_CLASSES)
    assert jnp.allclose(out, ref, atol=2e-3, rtol=2e-3), "mismatch vs reference"

    print("KERNEL_OK")
</pallas_src>

<mosaic_0001>
module attributes {stable_mosaic.version = 11 : i64} {
  func.func @fc_single_layer_kernel(%arg0: i32, %arg1: memref<8x40xbf16, #tpu.memory_space<vmem>>, %arg2: memref<40x32xbf16, #tpu.memory_space<vmem>>, %arg3: memref<32x640xbf16, #tpu.memory_space<vmem>>, %arg4: memref<8x128xf32, #tpu.memory_space<vmem>>) attributes {dimension_semantics = [#tpu.dimension_semantics<parallel>], iteration_bounds = array<i64: 1>, scalar_prefetch = 0 : i64, scratch_operands = 0 : i64, tpu.core_type = #tpu.core_type<tc>, window_params = [{transform_indices = @transform_0, window_bounds = array<i64: 8, 40>}, {pipeline_mode = #tpu.pipeline_mode<synchronous>, transform_indices = @transform_1, window_bounds = array<i64: 40, 32>}, {pipeline_mode = #tpu.pipeline_mode<synchronous>, transform_indices = @transform_2, window_bounds = array<i64: 32, 640>}, {transform_indices = @transform_3, window_bounds = array<i64: 8, 128>}]} {
    %c0 = arith.constant 0 : index
    %c0_0 = arith.constant 0 : index
    %0 = vector.load %arg1[%c0, %c0_0] : memref<8x40xbf16, #tpu.memory_space<vmem>>, vector<8x40xbf16>
    %c0_1 = arith.constant 0 : index
    %c0_2 = arith.constant 0 : index
    %1 = vector.load %arg2[%c0_1, %c0_2] : memref<40x32xbf16, #tpu.memory_space<vmem>>, vector<40x32xbf16>
    %c0_3 = arith.constant 0 : index
    %c0_4 = arith.constant 0 : index
    %2 = vector.load %arg3[%c0_3, %c0_4] : memref<32x640xbf16, #tpu.memory_space<vmem>>, vector<32x640xbf16>
    %cst = arith.constant dense<0.000000e+00> : vector<8x32xf32>
    %3 = tpu.matmul %0, %1, %cst {dimension_numbers = #tpu.dot_dimension_numbers<[1], [0], [0], [1], [0, 0, 1, 1], [], []>} : vector<8x40xbf16>, vector<40x32xbf16>, vector<8x32xf32> -> vector<8x32xf32>
    %cst_5 = arith.constant 0.000000e+00 : f32
    %4 = vector.broadcast %cst_5 : f32 to vector<8x32xf32>
    %5 = arith.maximumf %3, %4 : vector<8x32xf32>
    %6 = arith.truncf %5 : vector<8x32xf32> to vector<8x32xbf16>
    %cst_6 = arith.constant dense<0.000000e+00> : vector<8x640xf32>
    %7 = tpu.matmul %6, %2, %cst_6 {dimension_numbers = #tpu.dot_dimension_numbers<[1], [0], [0], [1], [0, 0, 1, 1], [], []>} : vector<8x32xbf16>, vector<32x640xbf16>, vector<8x640xf32> -> vector<8x640xf32>
    %8 = vector.extract_strided_slice %7 {offsets = [0, 0], sizes = [8, 128], strides = [1, 1]} : vector<8x640xf32> to vector<8x128xf32>
    %9 = vector.extract_strided_slice %7 {offsets = [0, 128], sizes = [8, 128], strides = [1, 1]} : vector<8x640xf32> to vector<8x128xf32>
    %10 = arith.maximumf %8, %9 : vector<8x128xf32>
    %11 = vector.extract_strided_slice %7 {offsets = [0, 256], sizes = [8, 128], strides = [1, 1]} : vector<8x640xf32> to vector<8x128xf32>
    %12 = arith.maximumf %10, %11 : vector<8x128xf32>
    %13 = vector.extract_strided_slice %7 {offsets = [0, 384], sizes = [8, 128], strides = [1, 1]} : vector<8x640xf32> to vector<8x128xf32>
    %14 = arith.maximumf %12, %13 : vector<8x128xf32>
    %15 = vector.extract_strided_slice %7 {offsets = [0, 512], sizes = [8, 128], strides = [1, 1]} : vector<8x640xf32> to vector<8x128xf32>
    %16 = arith.maximumf %14, %15 : vector<8x128xf32>
    %c64_i32 = arith.constant 64 : i32
    %17 = tpu.dynamic_rotate %16 by %c64_i32 dim 1 : vector<8x128xf32>, i32 -> vector<8x128xf32>
    %18 = arith.maximumf %16, %17 : vector<8x128xf32>
    %c32_i32 = arith.constant 32 : i32
    %19 = tpu.dynamic_rotate %18 by %c32_i32 dim 1 : vector<8x128xf32>, i32 -> vector<8x128xf32>
    %20 = arith.maximumf %18, %19 : vector<8x128xf32>
    %c16_i32 = arith.constant 16 : i32
    %21 = tpu.dynamic_rotate %20 by %c16_i32 dim 1 : vector<8x128xf32>, i32 -> vector<8x128xf32>
    %22 = arith.maximumf %20, %21 : vector<8x128xf32>
    %c0_7 = arith.constant 0 : index
    %c0_8 = arith.constant 0 : index
    %23 = vector.load %arg4[%c0_7, %c0_8] : memref<8x128xf32, #tpu.memory_space<vmem>>, vector<8x128xf32>
    tpu.vector_store %arg4[%c0_7, %c0_8], %22 {strides = array<i32>} : memref<8x128xf32, #tpu.memory_space<vmem>>, vector<8x128xf32>,
    return
  }
  func.func @transform_0(%arg0: i32) -> (i32, i32) {
    %c0_i32 = arith.constant 0 : i32
    %c0_i32_0 = arith.constant 0 : i32
    return %arg0, %c0_i32 : i32, i32
  }
  func.func @transform_1(%arg0: i32) -> (i32, i32) {
    %c0_i32 = arith.constant 0 : i32
    %c0_i32_0 = arith.constant 0 : i32
    %c0_i32_1 = arith.constant 0 : i32
    return %c0_i32, %c0_i32_0 : i32, i32
  }
  func.func @transform_2(%arg0: i32) -> (i32, i32) {
    %c0_i32 = arith.constant 0 : i32
    %c0_i32_0 = arith.constant 0 : i32
    %c0_i32_1 = arith.constant 0 : i32
    return %c0_i32, %c0_i32_0 : i32, i32
  }
  func.func @transform_3(%arg0: i32) -> (i32, i32) {
    %c0_i32 = arith.constant 0 : i32
    %c0_i32_0 = arith.constant 0 : i32
    return %arg0, %c0_i32 : i32, i32
  }
}

</mosaic_0001>

<llo_original>
// kernel: tpu_custom_call.1
$region0: #{tpu_custom_call.1}
  #allocation0 [shape = 'u32[]', space=smem, size = 0x4, offset = 0x4, fixed_abs, tag = 'smem constant byte address 0x4 - core index']
  #allocation1 [shape = 'u32[144,128]{1,0:T(1,128)}', space=vmem, size = 0x12000, scoped, tag = 'internal scratch']
  %s0 = inlined_call_operand.vmem [shape: bf16[8,40], index: 0, kind: input, shape index: {}]
  %s1 = inlined_call_operand.vmem [shape: bf16[40,32], index: 1, kind: input, shape index: {}]
  %s2 = inlined_call_operand.hbm [shape: bf16[32,640], index: 2, kind: input, shape index: {}]
  %s3 = inlined_call_operand.hbm [shape: f32[8,128], index: 3, kind: output, shape index: {}]
  %s4 = sld [smem:[#allocation0]]
  $region26: #{tpu_custom_call.1} parent=0
    _
  %s6 = ssub.s32 1, %s4
  %s7 = scalar_select 0, %s6, %s4
  $region1: #{tpu_custom_call.1} parent=0
    #allocation2 [shape = 'u8[40960]{0}', space=vmem, size = 0xa000, scoped, tag = 'input window, operand 2, single buffered']
    #allocation3 [shape = 's32[1]{0}', space=sflag, size = 0x4, scoped, tag = 'scoped memory for tpu_custom_call.1']
    #allocation4 [shape = 's32[1]{0}', space=sflag, size = 0x4, scoped, tag = 'scoped memory for tpu_custom_call.1']
    #allocation5 [shape = 'u8[4096]{0}', space=vmem, size = 0x1000, scoped, tag = 'output window, operand 0, single buffered']
    %8 = vsyncpa [#allocation3], 0
    %9 = vsyncpa [#allocation4], 0
    // Predicated region
    $region2: #{tpu_custom_call.1} parent=1 // pred_check
      _
    $region3: #{tpu_custom_call.1} parent=1 // pred_check_branch
      %11 = sbr.rel (0) target = $region5
    $region4: #{tpu_custom_call.1} parent=1 // pred_region
      _
    $region5: #{tpu_custom_call.1} parent=1 // pred_fallthru
      _
    // Predicated region
    $region6: #{tpu_custom_call.1} parent=1 // pred_check
      _
    $region7: #{tpu_custom_call.1} parent=1 // pred_check_branch
      %13 = sbr.rel (0) target = $region9
    $region8: #{tpu_custom_call.1} parent=1 // pred_region
      _
    $region9: #{tpu_custom_call.1} parent=1 // pred_fallthru
      _
    // Predicated region
    $region10: #{tpu_custom_call.1} parent=1 // pred_check
      _
    $region11: #{tpu_custom_call.1} parent=1 // pred_check_branch
      %15 = sbr.rel (0) target = $region13
    $region12: #{tpu_custom_call.1} parent=1 // pred_region
      %s17 = ssub.s32 1280, 1280
      %18 = vsyncadd [#allocation3], %s17
      %s19 = sshll.u32 [#allocation2], 4
      %s20 = int_to_ptr.vmem [resolvable:$true] %s19
      %25 = dma.hbm_to_vmem [thread:$0]  %s2, 1280, %s20, [#allocation3], 320, 320, 20
    $region13: #{tpu_custom_call.1} parent=1 // pred_fallthru
      _
    // Predicated region
    $region14: #{tpu_custom_call.1} parent=1 // pred_check
      _
    $region15: #{tpu_custom_call.1} parent=1 // pred_check_branch
      %27 = sbr.rel (0) target = $region17
    $region16: #{tpu_custom_call.1} parent=1 // pred_region
      %28 = dma.done [#allocation3], 1280
    $region17: #{tpu_custom_call.1} parent=1 // pred_fallthru
      _
    %v30 = vld [vmem:[%s0] sm:$0xf]
    %v31 = vld [vmem:[%s1] sm:$0xf]
    %v32 = vld [vmem:[%s1 + $0x4] sm:$0xf]
    %v33 = vld [vmem:[%s1 + $0x8] sm:$0xf]
    %v34 = vld [vmem:[%s1 + $0xc] sm:$0xf]
    %v35 = vld [vmem:[%s1 + $0x10] sm:$0xf]
    %v36 = vld [vmem:[#allocation2] sm:$0xff]
    %v37 = vld [vmem:[#allocation2 + $0x8] sm:$0xff]
    %v38 = vld [vmem:[#allocation2 + $0x10] sm:$0xf]
    %v39 = vld [vmem:[#allocation2 + $0x14] sm:$0xff]
    %v40 = vld [vmem:[#allocation2 + $0x1c] sm:$0xff]
    %v41 = vld [vmem:[#allocation2 + $0x24] sm:$0xf]
    %v42 = vld [vmem:[#allocation2 + $0x28] sm:$0xff]
    %v43 = vld [vmem:[#allocation2 + $0x30] sm:$0xff]
    %v44 = vld [vmem:[#allocation2 + $0x38] sm:$0xf]
    %v45 = vld [vmem:[#allocation2 + $0x3c] sm:$0xff]
    %v46 = vld [vmem:[#allocation2 + $0x44] sm:$0xff]
    %v47 = vld [vmem:[#allocation2 + $0x4c] sm:$0xf]
    %v53 = vunpack.c.l.b16 %v31
    %v54 = vunpack.c.l.b16 %v32
    %v55 = vunpack.c.l.b16 %v33
    %v56 = vunpack.c.l.b16 %v34
    %v57 = vunpack.c.l.b16 %v35
    %v58 = vpack.c.b16 %v54, %v53
    %v59 = vpack.c.b16 %v56, %v55
    %v60 = vpack.c.b16 %v57, %v57
    %vm63 = vcmask 326656
    %v65 = vsel %vm63, %v30, 0
    %vm67 = vcmask 1043456
    %v69 = vsel %vm67, %v60, 0
    %71 = vmatprep.subr.bf16.mxu0 0
    %72 = vmatpush1.bf16.msra.mxu0 %v58
    %73 = vmatprep.subr.bf16.mxu0 0
    %74 = vmatpush1.bf16.msra.mxu0 %v59
    %75 = vmatprep.subr.bf16.mxu0 0
    %76 = vmatpush1.bf16.msra.mxu0 %v69
    %77 = vmatprep.subr.bf16.mxu0 0
    %78 = vmatpush1.bf16.msra.mxu0 0
    %79 = vmatprep.subr.bf16.mxu0 0
    %80 = vmatpush1.bf16.msra.mxu0 0
    %81 = vmatprep.subr.bf16.mxu0 0
    %82 = vmatpush1.bf16.msra.mxu0 0
    %83 = vmatprep.subr.bf16.mxu0 0
    %84 = vmatpush1.bf16.msra.mxu0 0
    %85 = vmatprep.subr.bf16.mxu0 0
    %86 = vmatpush1.bf16.msra.mxu0 0
    %87 = vmatprep.subr.bf16.mxu0 0
    %88 = vmatpush1.bf16.msra.mxu0 0
    %89 = vmatprep.subr.bf16.mxu0 0
    %90 = vmatpush1.bf16.msra.mxu0 0
    %91 = vmatprep.subr.bf16.mxu0 0
    %92 = vmatpush1.bf16.msra.mxu0 0
    %93 = vmatprep.subr.bf16.mxu0 0
    %94 = vmatpush1.bf16.msra.mxu0 0
    %95 = vmatprep.subr.bf16.mxu0 0
    %96 = vmatpush1.bf16.msra.mxu0 0
    %97 = vmatprep.subr.bf16.mxu0 0
    %98 = vmatpush1.bf16.msra.mxu0 0
    %99 = vmatprep.subr.bf16.mxu0 0
    %100 = vmatpush1.bf16.msra.mxu0 0
    %101 = vmatprep.subr.bf16.mxu0 0
    %102 = vmatpush1.bf16.msra.mxu0 0
    %103 = vmatprep.mubr.bf16.mxu0 0
    %104 = vmatmul.mubr.bf16.gmra.mrb[0].mxu0 %v65
    %v105 = vpop.f32.mrb[0].mxu0
    %v106 = vadd.f32 0.0, %v105
    %v107 = vpop.f32.mrb[0].mxu0
    %v108 = vpop.f32.mrb[0].mxu0
    %v109 = vpop.f32.mrb[0].mxu0
    %110 = vdwg.mxu0
    %v111 = vmax.f32 %v106, 0.0
    %v112 = vpack.c.bf16 %v111, %v111
    %v125 = vunpack.c.l.b16 %v36
    %v126 = vunpack.c.h.b16 %v36
    %v127 = vunpack.c.l.b16 %v37
    %v128 = vunpack.c.h.b16 %v37
    %v129 = vunpack.c.l.b16 %v38
    %v130 = vunpack.c.l.b16 %v39
    %v131 = vunpack.c.h.b16 %v39
    %v132 = vunpack.c.l.b16 %v40
    %v133 = vunpack.c.h.b16 %v40
    %v134 = vunpack.c.l.b16 %v41
    %v135 = vunpack.c.l.b16 %v42
    %v136 = vunpack.c.h.b16 %v42
    %v137 = vunpack.c.l.b16 %v43
    %v138 = vunpack.c.h.b16 %v43
    %v139 = vunpack.c.l.b16 %v44
    %v140 = vunpack.c.l.b16 %v45
    %v141 = vunpack.c.h.b16 %v45
    %v142 = vunpack.c.l.b16 %v46
    %v143 = vunpack.c.h.b16 %v46
    %v144 = vunpack.c.l.b16 %v47
    %v145 = vpack.c.b16 %v130, %v125
    %v146 = vpack.c.b16 %v131, %v126
    %v147 = vpack.c.b16 %v132, %v127
    %v148 = vpack.c.b16 %v133, %v128
    %v149 = vpack.c.b16 %v134, %v129
    %v150 = vpack.c.b16 %v140, %v135
    %v151 = vpack.c.b16 %v141, %v136
    %v152 = vpack.c.b16 %v142, %v137
    %v153 = vpack.c.b16 %v143, %v138
    %v154 = vpack.c.b16 %v144, %v139
    %vm165 = vcmask 261120
    %v167 = vsel %vm165, %v112, 0
    %169 = vmatprep.subr.bf16.mxu0 %v146
    %170 = vmatpush1.bf16.msra.mxu0 %v145
    %171 = vmatprep.subr.bf16.mxu0 %v151
    %172 = vmatpush1.bf16.msra.mxu0 %v150
    %173 = vmatprep.subr.bf16.mxu0 0
    %174 = vmatpush1.bf16.msra.mxu0 0
    %175 = vmatprep.subr.bf16.mxu0 0
    %176 = vmatpush1.bf16.msra.mxu0 0
    %177 = vmatprep.subr.bf16.mxu0 0
    %178 = vmatpush1.bf16.msra.mxu0 0
    %179 = vmatprep.subr.bf16.mxu0 0
    %180 = vmatpush1.bf16.msra.mxu0 0
    %181 = vmatprep.subr.bf16.mxu0 0
    %182 = vmatpush1.bf16.msra.mxu0 0
    %183 = vmatprep.subr.bf16.mxu0 0
    %184 = vmatpush1.bf16.msra.mxu0 0
    %185 = vmatprep.subr.bf16.mxu0 0
    %186 = vmatpush1.bf16.msra.mxu0 0
    %187 = vmatprep.subr.bf16.mxu0 0
    %188 = vmatpush1.bf16.msra.mxu0 0
    %189 = vmatprep.subr.bf16.mxu0 0
    %190 = vmatpush1.bf16.msra.mxu0 0
    %191 = vmatprep.subr.bf16.mxu0 0
    %192 = vmatpush1.bf16.msra.mxu0 0
    %193 = vmatprep.subr.bf16.mxu0 0
    %194 = vmatpush1.bf16.msra.mxu0 0
    %195 = vmatprep.subr.bf16.mxu0 0
    %196 = vmatpush1.bf16.msra.mxu0 0
    %197 = vmatprep.subr.bf16.mxu0 0
    %198 = vmatpush1.bf16.msra.mxu0 0
    %199 = vmatprep.subr.bf16.mxu0 0
    %200 = vmatpush1.bf16.msra.mxu0 0
    %201 = vmatprep.mubr.bf16.mxu0 0
    %202 = vmatmul.mubr.bf16.gmra.mrb[0].mxu0 %v167
    %v203 = vpop.f32.mrb[0].mxu0
    %v204 = vadd.f32 0.0, %v203
    %v205 = vpop.f32.mrb[0].mxu0
    %v206 = vadd.f32 0.0, %v205
    %v207 = vpop.f32.mrb[0].mxu0
    %v208 = vpop.f32.mrb[0].mxu0
    %209 = vdwg.mxu0
    %210 = vmatprep.subr.bf16.mxu0 %v148
    %211 = vmatpush1.bf16.msra.mxu0 %v147
    %212 = vmatprep.subr.bf16.mxu0 %v153
    %213 = vmatpush1.bf16.msra.mxu0 %v152
    %214 = vmatprep.subr.bf16.mxu0 0
    %215 = vmatpush1.bf16.msra.mxu0 0
    %216 = vmatprep.subr.bf16.mxu0 0
    %217 = vmatpush1.bf16.msra.mxu0 0
    %218 = vmatprep.subr.bf16.mxu0 0
    %219 = vmatpush1.bf16.msra.mxu0 0
    %220 = vmatprep.subr.bf16.mxu0 0
    %221 = vmatpush1.bf16.msra.mxu0 0
    %222 = vmatprep.subr.bf16.mxu0 0
    %223 = vmatpush1.bf16.msra.mxu0 0
    %224 = vmatprep.subr.bf16.mxu0 0
    %225 = vmatpush1.bf16.msra.mxu0 0
    %226 = vmatprep.subr.bf16.mxu0 0
    %227 = vmatpush1.bf16.msra.mxu0 0
    %228 = vmatprep.subr.bf16.mxu0 0
    %229 = vmatpush1.bf16.msra.mxu0 0
    %230 = vmatprep.subr.bf16.mxu0 0
    %231 = vmatpush1.bf16.msra.mxu0 0
    %232 = vmatprep.subr.bf16.mxu0 0
    %233 = vmatpush1.bf16.msra.mxu0 0
    %234 = vmatprep.subr.bf16.mxu0 0
    %235 = vmatpush1.bf16.msra.mxu0 0
    %236 = vmatprep.subr.bf16.mxu0 0
    %237 = vmatpush1.bf16.msra.mxu0 0
    %238 = vmatprep.subr.bf16.mxu0 0
    %239 = vmatpush1.bf16.msra.mxu0 0
    %240 = vmatprep.subr.bf16.mxu0 0
    %241 = vmatpush1.bf16.msra.mxu0 0
    %242 = vmatprep.mubr.bf16.mxu0 0
    %243 = vmatmul.mubr.bf16.gmra.mrb[0].mxu0 %v167
    %v244 = vpop.f32.mrb[0].mxu0
    %v245 = vadd.f32 0.0, %v244
    %v246 = vpop.f32.mrb[0].mxu0
    %v247 = vadd.f32 0.0, %v246
    %v248 = vpop.f32.mrb[0].mxu0
    %v249 = vpop.f32.mrb[0].mxu0
    %250 = vdwg.mxu0
    %251 = vmatprep.subr.bf16.mxu0 0
    %252 = vmatpush1.bf16.msra.mxu0 %v149
    %253 = vmatprep.subr.bf16.mxu0 0
    %254 = vmatpush1.bf16.msra.mxu0 %v154
    %255 = vmatprep.subr.bf16.mxu0 0
    %256 = vmatpush1.bf16.msra.mxu0 0
    %257 = vmatprep.subr.bf16.mxu0 0
    %258 = vmatpush1.bf16.msra.mxu0 0
    %259 = vmatprep.subr.bf16.mxu0 0
    %260 = vmatpush1.bf16.msra.mxu0 0
    %261 = vmatprep.subr.bf16.mxu0 0
    %262 = vmatpush1.bf16.msra.mxu0 0
    %263 = vmatprep.subr.bf16.mxu0 0
    %264 = vmatpush1.bf16.msra.mxu0 0
    %265 = vmatprep.subr.bf16.mxu0 0
    %266 = vmatpush1.bf16.msra.mxu0 0
    %267 = vmatprep.subr.bf16.mxu0 0
    %268 = vmatpush1.bf16.msra.mxu0 0
    %269 = vmatprep.subr.bf16.mxu0 0
    %270 = vmatpush1.bf16.msra.mxu0 0
    %271 = vmatprep.subr.bf16.mxu0 0
    %272 = vmatpush1.bf16.msra.mxu0 0
    %273 = vmatprep.subr.bf16.mxu0 0
    %274 = vmatpush1.bf16.msra.mxu0 0
    %275 = vmatprep.subr.bf16.mxu0 0
    %276 = vmatpush1.bf16.msra.mxu0 0
    %277 = vmatprep.subr.bf16.mxu0 0
    %278 = vmatpush1.bf16.msra.mxu0 0
    %279 = vmatprep.subr.bf16.mxu0 0
    %280 = vmatpush1.bf16.msra.mxu0 0
    %281 = vmatprep.subr.bf16.mxu0 0
    %282 = vmatpush1.bf16.msra.mxu0 0
    %283 = vmatprep.mubr.bf16.mxu0 0
    %284 = vmatmul.mubr.bf16.gmra.mrb[0].mxu0 %v167
    %v285 = vpop.f32.mrb[0].mxu0
    %v286 = vadd.f32 0.0, %v285
    %v287 = vpop.f32.mrb[0].mxu0
    %v288 = vpop.f32.mrb[0].mxu0
    %v289 = vpop.f32.mrb[0].mxu0
    %290 = vdwg.mxu0
    %v291 = vmax.f32 %v204, %v206
    %v292 = vmax.f32 %v291, %v245
    %v293 = vmax.f32 %v292, %v247
    %v294 = vmax.f32 %v293, %v286
    %295 = vrot.lane.b32.xlu0 %v294, 64
    %v296 = vpop.permute.xlu0 %295
    %v297 = vmax.f32 %v294, %v296
    %298 = vrot.lane.b32.xlu0 %v297, 32
    %v299 = vpop.permute.xlu0 %298
    %v300 = vmax.f32 %v297, %v299
    %301 = vrot.lane.b32.xlu0 %v300, 16
    %v302 = vpop.permute.xlu0 %301
    %v303 = vmax.f32 %v300, %v302
    %304 = vst [vmem:[#allocation5] sm:$0xff] %v303
    // Predicated region
    $region18: #{tpu_custom_call.1} parent=1 // pred_check
      _
    $region19: #{tpu_custom_call.1} parent=1 // pred_check_branch
      %306 = sbr.rel (0) target = $region21
    $region20: #{tpu_custom_call.1} parent=1 // pred_region
      %s308 = ssub.s32 128, 128
      %309 = vsyncadd [#allocation4], %s308
      %s311 = sshll.u32 [#allocation5], 4
      %s312 = int_to_ptr.vmem [resolvable:$true] %s311
      %314 = dma.vmem_to_hbm [thread:$0]  %s312, 128, %s3, [#allocation4]
    $region21: #{tpu_custom_call.1} parent=1 // pred_fallthru
      _
    // Predicated region
    $region22: #{tpu_custom_call.1} parent=1 // pred_check
      _
    $region23: #{tpu_custom_call.1} parent=1 // pred_check_branch
      %316 = sbr.rel (0) target = $region25
    $region24: #{tpu_custom_call.1} parent=1 // pred_region
      %317 = dma.done [#allocation4], 128
    $region25: #{tpu_custom_call.1} parent=1 // pred_fallthru
      _
    %318 = vsyncpa [#allocation3], 1
    %319 = vsyncpa [#allocation4], 1

</llo_original>
